<compile_context>
chip_gen: v7x
topology: tpu7x:2x2x1
jax: 0.10.0
libtpu: 0.0.40
codegen_flags: <defaults>
</compile_context>

<pallas_src>
import functools

import jax
import jax.numpy as jnp
from jax.experimental import pallas as pl
from jax.experimental.pallas import tpu as pltpu


def _label_smoothing_kernel(x_ref, t_ref, out_ref, *, confidence, smoothing, n_rows):
    x = x_ref[...].astype(jnp.float32)               # (TR, C)
    t = t_ref[...]                                   # (TR, 1) int32
    tr, c = x.shape

    # Numerically stable per-row logsumexp (the only nonlinearity).
    m = jnp.max(x, axis=-1, keepdims=True)                            # (TR, 1)
    s = jnp.sum(jnp.exp(x - m), axis=-1, keepdims=True)               # (TR, 1)
    lse = m + jnp.log(s)                                              # (TR, 1)

    # Linear terms directly on raw x (no dense weight matrix):
    #   loss_row = lse - confidence * x[t] - (smoothing / C) * sum_j x_j
    sum_x = jnp.sum(x, axis=-1, keepdims=True)                        # (TR, 1)
    col_ids = jax.lax.broadcasted_iota(jnp.int32, (tr, c), 1)
    gathered = jnp.sum(jnp.where(col_ids == t, x, 0.0),
                       axis=-1, keepdims=True)                        # (TR, 1)

    sm_c = smoothing / c
    loss_row = lse - confidence * gathered - sm_c * sum_x             # (TR, 1)

    # Mask rows past the real batch size (only the tail block has any), then
    # reduce to a single per-block partial sum.
    row_ids = pl.program_id(0) * tr + jax.lax.broadcasted_iota(
        jnp.int32, (tr, 1), 0)
    partial = jnp.sum(jnp.where(row_ids < n_rows, loss_row, 0.0))     # scalar
    out_ref[...] = jnp.reshape(partial, (1, 1, 1))


def label_smoothing_loss(x, target, smoothing=0.1, *, max_tile_rows=None):
    """x: [N, C] float logits, target: [N] int class indices. Returns scalar f32."""
    n, c = x.shape
    confidence = 1.0 - smoothing
    isz = int(jnp.dtype(x.dtype).itemsize)

    # Generation-aware VMEM capacity (per TensorCore).
    try:
        vmem_cap = int(pltpu.get_tpu_info().vmem_capacity_bytes)
    except Exception:
        vmem_cap = 64 << 20  # conservative default (v7x per-TC)

    # Per-row VMEM cost: 2x double-buffered x block + 2x lane-padded (TR,1)
    # int32 target block (128 lanes * 4 B) + ~5 (TR,C) f32 elementwise temps.
    per_row_vmem = 2 * c * isz + 2 * 128 * 4 + 5 * c * 4
    budget = int(vmem_cap * 0.6)
    tile_rows = max(8, (budget // per_row_vmem) // 8 * 8)
    if max_tile_rows is not None:
        tile_rows = min(tile_rows, max(8, (int(max_tile_rows) // 8) * 8))
    if tile_rows >= n:
        tile_rows = n                      # single block covering the full array
    grid = -(-n // tile_rows)              # tail block (if any) masked in-kernel

    t2 = target.astype(jnp.int32).reshape(n, 1)

    vmem_need = tile_rows * per_row_vmem + (2 << 20)      # + headroom / out bufs
    vmem_limit = int(min(max(vmem_need, 32 << 20), int(vmem_cap * 0.9)))

    kernel = functools.partial(
        _label_smoothing_kernel,
        confidence=confidence, smoothing=smoothing, n_rows=n)

    partials = pl.pallas_call(
        kernel,
        out_shape=jax.ShapeDtypeStruct((grid, 1, 1), jnp.float32),
        grid_spec=pltpu.PrefetchScalarGridSpec(
            num_scalar_prefetch=0,
            grid=(grid,),
            in_specs=[
                pl.BlockSpec((tile_rows, c), lambda i: (i, 0)),
                pl.BlockSpec((tile_rows, 1), lambda i: (i, 0)),
            ],
            out_specs=pl.BlockSpec((1, 1, 1), lambda i: (i, 0, 0)),
        ),
        compiler_params=pltpu.CompilerParams(
            dimension_semantics=("parallel",),
            vmem_limit_bytes=vmem_limit,
        ),
        cost_estimate=pl.CostEstimate(
            flops=6 * n * c,
            transcendentals=n * c,
            bytes_accessed=n * c * isz + n * 4 + grid * 4,
        ),
    )(x, t2)

    # Batch mean over the real rows (padded/tail rows already masked to 0).
    return jnp.sum(partials) / n


def _reference(x, target, smoothing=0.1):
    confidence = 1.0 - smoothing
    logprobs = jax.nn.log_softmax(x.astype(jnp.float32), axis=-1)
    nll = -jnp.take_along_axis(
        logprobs, target[:, None].astype(jnp.int32), axis=-1)[:, 0]
    smooth = -jnp.mean(logprobs, axis=-1)
    return jnp.mean(confidence * nll + smoothing * smooth)


if __name__ == "__main__":
    key = jax.random.PRNGKey(0)
    smoothing = 0.1

    # Case 1: small aligned shape (single block, grid=1).
    kx, kt, key = jax.random.split(key, 3)
    N, C = 16, 128
    x = jax.random.normal(kx, (N, C), dtype=jnp.float32)
    target = jax.random.randint(kt, (N,), 0, C, dtype=jnp.int32)
    loss = jax.block_until_ready(label_smoothing_loss(x, target, smoothing))
    ref = _reference(x, target, smoothing)
    assert jnp.allclose(loss, ref, atol=1e-5, rtol=1e-4), (loss, ref)

    # Case 2: ragged N, non-128 C (full-array block, grid=1).
    kx, kt, key = jax.random.split(key, 3)
    N2, C2 = 13, 96
    x2 = jax.random.normal(kx, (N2, C2), dtype=jnp.float32)
    target2 = jax.random.randint(kt, (N2,), 0, C2, dtype=jnp.int32)
    loss2 = jax.block_until_ready(label_smoothing_loss(x2, target2, smoothing))
    ref2 = _reference(x2, target2, smoothing)
    assert jnp.allclose(loss2, ref2, atol=1e-5, rtol=1e-4), (loss2, ref2)

    # Case 3: multi-block grid with a masked partial tail block (no padding copy).
    kx, kt = jax.random.split(key)
    N3, C3 = 300, 64
    x3 = jax.random.normal(kx, (N3, C3), dtype=jnp.float32)
    target3 = jax.random.randint(kt, (N3,), 0, C3, dtype=jnp.int32)
    loss3 = jax.block_until_ready(
        label_smoothing_loss(x3, target3, smoothing, max_tile_rows=128))
    ref3 = _reference(x3, target3, smoothing)
    assert jnp.allclose(loss3, ref3, atol=1e-5, rtol=1e-4), (loss3, ref3)

    print("KERNEL_OK")
</pallas_src>

<mosaic_0001>
module attributes {stable_mosaic.version = 11 : i64} {
  func.func @_label_smoothing_kernel(%arg0: i32, %arg1: memref<16x128xf32, #tpu.memory_space<vmem>>, %arg2: memref<16x1xi32, #tpu.memory_space<vmem>>, %arg3: memref<1x1x1xf32, #tpu.memory_space<vmem>>) attributes {dimension_semantics = [#tpu.dimension_semantics<parallel>], iteration_bounds = array<i64: 1>, scalar_prefetch = 0 : i64, scratch_operands = 0 : i64, tpu.core_type = #tpu.core_type<tc>, window_params = [{transform_indices = @transform_0, window_bounds = array<i64: 16, 128>}, {transform_indices = @transform_1, window_bounds = array<i64: 16, 1>}, {transform_indices = @transform_2, window_bounds = array<i64: 1, 1, 1>}]} {
    %c0 = arith.constant 0 : index
    %c0_0 = arith.constant 0 : index
    %0 = vector.load %arg1[%c0, %c0_0] : memref<16x128xf32, #tpu.memory_space<vmem>>, vector<16x128xf32>
    %c0_1 = arith.constant 0 : index
    %c0_2 = arith.constant 0 : index
    %1 = vector.load %arg2[%c0_1, %c0_2] : memref<16x1xi32, #tpu.memory_space<vmem>>, vector<16x1xi32>
    %cst = arith.constant dense<0xFF800000> : vector<16xf32>
    %2 = vector.multi_reduction <maximumf>, %0, %cst [1] : vector<16x128xf32> to vector<16xf32>
    %3 = vector.shape_cast %2 : vector<16xf32> to vector<16x1xf32>
    %4 = vector.broadcast %3 : vector<16x1xf32> to vector<16x128xf32>
    %5 = arith.subf %0, %4 : vector<16x128xf32>
    %6 = math.exp %5 : vector<16x128xf32>
    %cst_3 = arith.constant dense<0.000000e+00> : vector<16xf32>
    %7 = vector.multi_reduction <add>, %6, %cst_3 [1] : vector<16x128xf32> to vector<16xf32>
    %8 = vector.shape_cast %7 : vector<16xf32> to vector<16x1xf32>
    %9 = math.log %8 : vector<16x1xf32>
    %10 = arith.addf %3, %9 : vector<16x1xf32>
    %cst_4 = arith.constant dense<0.000000e+00> : vector<16xf32>
    %11 = vector.multi_reduction <add>, %0, %cst_4 [1] : vector<16x128xf32> to vector<16xf32>
    %12 = vector.shape_cast %11 : vector<16xf32> to vector<16x1xf32>
    %13 = tpu.iota {dimensions = array<i32: 1>} : vector<16x128xi32>
    %14 = vector.broadcast %1 : vector<16x1xi32> to vector<16x128xi32>
    %15 = arith.cmpi eq, %13, %14 : vector<16x128xi32>
    %cst_5 = arith.constant 0.000000e+00 : f32
    %16 = vector.broadcast %cst_5 : f32 to vector<16x128xf32>
    %17 = arith.select %15, %0, %16 : vector<16x128xi1>, vector<16x128xf32>
    %cst_6 = arith.constant dense<0.000000e+00> : vector<16xf32>
    %18 = vector.multi_reduction <add>, %17, %cst_6 [1] : vector<16x128xf32> to vector<16xf32>
    %19 = vector.shape_cast %18 : vector<16xf32> to vector<16x1xf32>
    %cst_7 = arith.constant 0.899999976 : f32
    %20 = vector.broadcast %cst_7 : f32 to vector<16x1xf32>
    %21 = arith.mulf %20, %19 : vector<16x1xf32>
    %22 = arith.subf %10, %21 : vector<16x1xf32>
    %cst_8 = arith.constant 7.812500e-04 : f32
    %23 = vector.broadcast %cst_8 : f32 to vector<16x1xf32>
    %24 = arith.mulf %23, %12 : vector<16x1xf32>
    %25 = arith.subf %22, %24 : vector<16x1xf32>
    %c16_i32 = arith.constant 16 : i32
    %26 = arith.muli %arg0, %c16_i32 : i32
    %27 = tpu.iota {dimensions = array<i32: 0>} : vector<16x1xi32>
    %28 = vector.broadcast %26 : i32 to vector<16x1xi32>
    %29 = arith.addi %28, %27 : vector<16x1xi32>
    %c16_i32_9 = arith.constant 16 : i32
    %30 = vector.broadcast %c16_i32_9 : i32 to vector<16x1xi32>
    %31 = arith.cmpi slt, %29, %30 : vector<16x1xi32>
    %cst_10 = arith.constant 0.000000e+00 : f32
    %32 = vector.broadcast %cst_10 : f32 to vector<16x1xf32>
    %33 = arith.select %31, %25, %32 : vector<16x1xi1>, vector<16x1xf32>
    %34 = vector.shape_cast %33 : vector<16x1xf32> to vector<1x16x1xf32>
    %cst_11 = arith.constant dense<0.000000e+00> : vector<1xf32>
    %35 = vector.multi_reduction <add>, %34, %cst_11 [1, 2] : vector<1x16x1xf32> to vector<1xf32>
    %36 = vector.shape_cast %35 : vector<1xf32> to vector<1x1x1xf32>
    %37 = vector.extract %36[0, 0, 0] : f32 from vector<1x1x1xf32>
    %38 = vector.broadcast %37 : f32 to vector<1x1x1xf32>
    %c0_12 = arith.constant 0 : index
    %c0_13 = arith.constant 0 : index
    %c0_14 = arith.constant 0 : index
    %39 = vector.load %arg3[%c0_12, %c0_13, %c0_14] : memref<1x1x1xf32, #tpu.memory_space<vmem>>, vector<1x1x1xf32>
    tpu.vector_store %arg3[%c0_12, %c0_13, %c0_14], %38 {strides = array<i32>} : memref<1x1x1xf32, #tpu.memory_space<vmem>>, vector<1x1x1xf32>,
    return
  }
  func.func @transform_0(%arg0: i32) -> (i32, i32) {
    %c0_i32 = arith.constant 0 : i32
    %c0_i32_0 = arith.constant 0 : i32
    return %arg0, %c0_i32 : i32, i32
  }
  func.func @transform_1(%arg0: i32) -> (i32, i32) {
    %c0_i32 = arith.constant 0 : i32
    %c0_i32_0 = arith.constant 0 : i32
    return %arg0, %c0_i32 : i32, i32
  }
  func.func @transform_2(%arg0: i32) -> (i32, i32, i32) {
    %c0_i32 = arith.constant 0 : i32
    %c0_i32_0 = arith.constant 0 : i32
    %c0_i32_1 = arith.constant 0 : i32
    return %arg0, %c0_i32, %c0_i32_0 : i32, i32, i32
  }
}

</mosaic_0001>

<llo_original>
// kernel: tpu_custom_call.1
$region0: #{tpu_custom_call.1}
  #allocation0 [shape = 'u32[]', space=smem, size = 0x4, offset = 0x4, fixed_abs, tag = 'smem constant byte address 0x4 - core index']
  #allocation1 [shape = 'u32[144,128]{1,0:T(1,128)}', space=vmem, size = 0x12000, scoped, tag = 'internal scratch']
  %s0 = inlined_call_operand.vmem [shape: f32[16,128], index: 0, kind: input, shape index: {}]
  %s1 = inlined_call_operand.vmem [shape: s32[16,1], index: 1, kind: input, shape index: {}]
  %s2 = inlined_call_operand.hbm [shape: f32[1,1,1], index: 2, kind: output, shape index: {}]
  %s3 = sld [smem:[#allocation0]]
  $region18: #{tpu_custom_call.1} parent=0
    _
  %s5 = ssub.s32 1, %s3
  %s6 = scalar_select 0, %s5, %s3
  $region1: #{tpu_custom_call.1} parent=0
    #allocation2 [shape = 'u8[512]{0}', space=vmem, size = 0x400, scoped, tag = 'output window, operand 0, single buffered']
    #allocation3 [shape = 's32[1]{0}', space=sflag, size = 0x4, scoped, tag = 'scoped memory for tpu_custom_call.1']
    %7 = vsyncpa [#allocation3], 0
    // Predicated region
    $region2: #{tpu_custom_call.1} parent=1 // pred_check
      _
    $region3: #{tpu_custom_call.1} parent=1 // pred_check_branch
      %9 = sbr.rel (0) target = $region5
    $region4: #{tpu_custom_call.1} parent=1 // pred_region
      _
    $region5: #{tpu_custom_call.1} parent=1 // pred_fallthru
      _
    // Predicated region
    $region6: #{tpu_custom_call.1} parent=1 // pred_check
      _
    $region7: #{tpu_custom_call.1} parent=1 // pred_check_branch
      %11 = sbr.rel (0) target = $region9
    $region8: #{tpu_custom_call.1} parent=1 // pred_region
      _
    $region9: #{tpu_custom_call.1} parent=1 // pred_fallthru
      _
    %v12 = vld [vmem:[%s0] sm:$0xff]
    %v13 = vld [vmem:[%s0 + $0x8] sm:$0xff]
    %v14 = vld [vmem:[%s1] sm:$0xff]
    %v15 = vld [vmem:[%s1 + $0x8] sm:$0xff]
    %16 = vmax.xlane.f32.xlu0 %v12
    %v17 = vpop.xlane.xlu0 %16
    %18 = vmax.xlane.f32.xlu0 %v13
    %v19 = vpop.xlane.xlu0 %18
    %v20 = vsub.f32 %v12, %v17
    %v21 = vsub.f32 %v13, %v19
    %v22 = vmul.f32 %v20, 1.442695
    %v23 = vpow.pop %v22
    %v24 = vmul.f32 %v21, 1.442695
    %v25 = vpow.pop %v24
    %26 = vadd.xlane.f32.xlu0 %v23
    %v27 = vpop.xlane.xlu0 %26
    %28 = vadd.xlane.f32.xlu0 %v25
    %v29 = vpop.xlane.xlu0 %28
    %v30 = vlog2.pop %v27
    %v31 = vmul.f32 %v30, 0.6931472
    %v32 = vlog2.pop %v29
    %v33 = vmul.f32 %v32, 0.6931472
    %v34 = vadd.f32 %v17, %v31
    %v35 = vadd.f32 %v19, %v33
    %36 = vadd.xlane.f32.xlu0 %v12
    %v37 = vpop.xlane.xlu0 %36
    %38 = vadd.xlane.f32.xlu0 %v13
    %v39 = vpop.xlane.xlu0 %38
    %v40 = vlaneseq
    %v41 = vand.u32 %v40, 127
    %42 = vset.pattern.permute.xlu0 0
    %43 = vperm.xlu0 %42, %v14
    %v44 = vpop.permute.xlu0 %43
    %45 = vset.pattern.permute.xlu0 0
    %46 = vperm.xlu0 %45, %v15
    %v47 = vpop.permute.xlu0 %46
    %vm48 = vcmp.eq.s32.totalorder %v41, %v44
    %vm49 = vcmp.eq.s32.totalorder %v41, %v47
    %v50 = vsel %vm48, %v12, 0.0
    %v51 = vsel %vm49, %v13, 0.0
    %52 = vadd.xlane.f32.xlu0 %v50
    %v53 = vpop.xlane.xlu0 %52
    %54 = vadd.xlane.f32.xlu0 %v51
    %v55 = vpop.xlane.xlu0 %54
    %v56 = vmul.f32 %v53, 0.9
    %v57 = vmul.f32 %v55, 0.9
    %v58 = vsub.f32 %v34, %v56
    %v59 = vsub.f32 %v35, %v57
    %v60 = vmul.f32 %v37, 0.00078125
    %v61 = vmul.f32 %v39, 0.00078125
    %v62 = vsub.f32 %v58, %v60
    %v63 = vsub.f32 %v59, %v61
    %s64 = smul.u32 0, 16
    %v65 = vlaneseq
    %v66 = vshrl.u32 %v65, 7
    %v67 = vadd.s32 %v66, 8
    %v68 = vstv %s64
    %v69 = vadd.s32 %v68, %v66
    %v70 = vadd.s32 %v68, %v67
    %vm71 = vcmp.lt.s32.totalorder %v69, 16
    %vm72 = vcmp.lt.s32.totalorder %v70, 16
    %v73 = vsel %vm71, %v62, 0.0
    %v74 = vsel %vm72, %v63, 0.0
    %vm75 = vcmask 7168
    %v76 = vsel %vm75, %v73, 0.0
    %v77 = vsel %vm75, %v74, 0.0
    %v78 = vadd.f32 %v76, %v77
    %79 = vadd.xlane.f32.xlu0 %v78
    %v80 = vpop.xlane.xlu0 %79
    %v81 = vrot.slane %v80, 4
    %v82 = vadd.f32 %v80, %v81
    %v83 = vrot.slane %v82, 2
    %v84 = vadd.f32 %v82, %v83
    %v85 = vrot.slane %v84, 1
    %v86 = vadd.f32 %v84, %v85
    %s87 = vtos %v86
    %v88 = vstv %s87
    %vm89 = vcmask 0
    %90 = vst.msk [vmem:[#allocation2] sm:$0x1] %vm89, %v88
    // Predicated region
    $region10: #{tpu_custom_call.1} parent=1 // pred_check
      _
    $region11: #{tpu_custom_call.1} parent=1 // pred_check_branch
      %92 = sbr.rel (0) target = $region13
    $region12: #{tpu_custom_call.1} parent=1 // pred_region
      %s94 = ssub.s32 16, 16
      %95 = vsyncadd [#allocation3], %s94
      %s97 = sshll.u32 [#allocation2], 4
      %s98 = int_to_ptr.vmem [resolvable:$true] %s97
      %100 = dma.vmem_to_hbm [thread:$0]  %s98, 16, %s2, [#allocation3]
    $region13: #{tpu_custom_call.1} parent=1 // pred_fallthru
      _
    // Predicated region
    $region14: #{tpu_custom_call.1} parent=1 // pred_check
      _
    $region15: #{tpu_custom_call.1} parent=1 // pred_check_branch
      %102 = sbr.rel (0) target = $region17
    $region16: #{tpu_custom_call.1} parent=1 // pred_region
      %103 = dma.done [#allocation3], 16
    $region17: #{tpu_custom_call.1} parent=1 // pred_fallthru
      _
    %104 = vsyncpa [#allocation3], 1

</llo_original>
